<compile_context>
chip_gen: v5e
topology: v5e:2x2
jax: 0.10.0
libtpu: 0.0.40
codegen_flags: <defaults>
</compile_context>

<pallas_src>
import functools
import math

import jax
import jax.numpy as jnp
from jax.experimental import pallas as pl
from jax.experimental.pallas import tpu as pltpu


# ----------------------------------------------------------------------------
# Kernel 1 & 3: row-tiled matmul + bias (used for fused QKV proj and out proj)
# ----------------------------------------------------------------------------
def _matmul_bias_kernel(x_ref, w_ref, b_ref, o_ref):
    acc = jnp.dot(x_ref[...], w_ref[...], preferred_element_type=jnp.float32)
    o_ref[...] = (acc + b_ref[...]).astype(o_ref.dtype)


def _matmul_bias(x, w, b, *, out_dtype, tm=256, vmem_limit=64 * 1024 * 1024):
    """out = x @ w + b.   x:(M,K)  w:(K,N)  b:(1,N)  ->  (M,N) in out_dtype.

    Row-tiled grid; w/b use a constant index_map so they stay VMEM-resident.
    N is zero-padded to a multiple of 128 for lane-dense (unmasked) stores.
    """
    M, K = x.shape
    Kw, N = w.shape
    assert K == Kw
    n_pad = (-N) % 128
    if n_pad:  # lane-dense output (review: avoid masked vst.msk partial stores)
        w = jnp.pad(w, ((0, 0), (0, n_pad)))
        b = jnp.pad(b, ((0, 0), (0, n_pad)))
    Np = N + n_pad

    tm = min(tm, M)
    assert M % tm == 0, "row count must divide the row tile at this toy scale"
    grid = (M // tm,)

    cost = pl.CostEstimate(
        flops=2 * M * K * Np + M * Np,
        transcendentals=0,
        bytes_accessed=(x.size * x.dtype.itemsize
                        + w.size * w.dtype.itemsize
                        + b.size * b.dtype.itemsize
                        + M * Np * jnp.dtype(out_dtype).itemsize),
    )

    out = pl.pallas_call(
        _matmul_bias_kernel,
        out_shape=jax.ShapeDtypeStruct((M, Np), out_dtype),
        grid=grid,
        in_specs=[
            pl.BlockSpec((tm, K), lambda i: (i, 0)),
            # Weight / bias: same block every grid step -> VMEM-resident.
            # TODO(synk): pipeline_mode=pl.Buffered(1) here when supported.
            pl.BlockSpec((K, Np), lambda i: (0, 0)),
            pl.BlockSpec((1, Np), lambda i: (0, 0)),
        ],
        out_specs=pl.BlockSpec((tm, Np), lambda i: (i, 0)),
        compiler_params=pltpu.CompilerParams(
            dimension_semantics=("parallel",),
            vmem_limit_bytes=vmem_limit),
        cost_estimate=cost,
    )(x, w, b)
    return out[:, :N] if n_pad else out


# ----------------------------------------------------------------------------
# Kernel 2: flash attention over a (batch*head, q-tile, kv-tile) grid
# ----------------------------------------------------------------------------
def _flash_attn_kernel(q_ref, k_ref, v_ref, o_ref, m_sc, l_sc, acc_sc, *, scale):
    kv = pl.program_id(2)

    @pl.when(kv == 0)
    def _init():
        m_sc[...] = jnp.full(m_sc.shape, -jnp.inf, m_sc.dtype)
        l_sc[...] = jnp.zeros(l_sc.shape, l_sc.dtype)
        acc_sc[...] = jnp.zeros(acc_sc.shape, acc_sc.dtype)

    q = q_ref[0]   # (tq, d_head)
    k = k_ref[0]   # (tk, d_head)
    v = v_ref[0]   # (tk, d_head)

    # q @ k^T via dot_general contracting the last dim of both (no explicit .T).
    s = jax.lax.dot_general(q, k, (((1,), (1,)), ((), ())),
                            preferred_element_type=jnp.float32) * scale  # (tq, tk)

    m_prev = m_sc[...]                                           # (tq, 1) f32
    m_new = jnp.maximum(m_prev, jnp.max(s, axis=-1, keepdims=True))
    alpha = jnp.exp(m_prev - m_new)
    p = jnp.exp(s - m_new)                                       # (tq, tk) f32

    l_sc[...] = alpha * l_sc[...] + jnp.sum(p, axis=-1, keepdims=True)
    acc_sc[...] = alpha * acc_sc[...] + jnp.dot(
        p.astype(v.dtype), v, preferred_element_type=jnp.float32)
    m_sc[...] = m_new

    @pl.when(kv == pl.num_programs(2) - 1)
    def _finalize():
        # Exact divide (once per query tile) -> keeps parity with the reference.
        o_ref[0] = (acc_sc[...] / l_sc[...]).astype(o_ref.dtype)


def _flash_attention(q, k, v, *, scale, tq=256, tk=512,
                     vmem_limit=64 * 1024 * 1024):
    """q,k,v: (G, S, d_head) head-major.  Returns (G, S, d_head)."""
    G, S, dh = q.shape
    tq = min(tq, S)
    tk = min(tk, S)
    # TODO(synk): mask the ragged KV tail if S is not a multiple of the tiles.
    assert S % tq == 0 and S % tk == 0

    cost = pl.CostEstimate(
        flops=4 * G * S * S * dh,
        transcendentals=G * S * S,
        bytes_accessed=4 * q.size * q.dtype.itemsize,
    )

    return pl.pallas_call(
        functools.partial(_flash_attn_kernel, scale=scale),
        out_shape=jax.ShapeDtypeStruct((G, S, dh), q.dtype),
        grid=(G, S // tq, S // tk),
        in_specs=[
            pl.BlockSpec((1, tq, dh), lambda g, qi, ki: (g, qi, 0)),
            pl.BlockSpec((1, tk, dh), lambda g, qi, ki: (g, ki, 0)),
            pl.BlockSpec((1, tk, dh), lambda g, qi, ki: (g, ki, 0)),
        ],
        out_specs=pl.BlockSpec((1, tq, dh), lambda g, qi, ki: (g, qi, 0)),
        scratch_shapes=[
            pltpu.VMEM((tq, 1), jnp.float32),    # running max  (f32 always)
            pltpu.VMEM((tq, 1), jnp.float32),    # running denom (f32 always)
            pltpu.VMEM((tq, dh), jnp.float32),   # output accumulator (f32 always)
        ],
        compiler_params=pltpu.CompilerParams(
            # batch*head and q-tile independent (megacore on v7x); KV is the
            # reduction carried in scratch -> arbitrary.
            dimension_semantics=("parallel", "parallel", "arbitrary"),
            vmem_limit_bytes=vmem_limit),
        cost_estimate=cost,
    )(q, k, v)


# ----------------------------------------------------------------------------
# Wrapper: full CrossAttention.forward(x, y)
# ----------------------------------------------------------------------------
def cross_attention(x, y, params, *, n_heads, compute_dtype=None,
                    tm=256, tq=256, tk=512):
    """Pallas-backed equivalent of CrossAttention.forward(x, y).

    As in the reference forward(), q, k AND v are all projected from `x`;
    `y` is accepted only for signature parity.  Call under jax.jit so the
    weight fusion / head-split reshapes fuse with the surrounding graph.
    """
    del y  # unused by the reference forward pass
    B, S, E = x.shape
    H = n_heads
    dh = E // H
    assert H * dh == E
    wq, bq, wk, bk, wv, bv, wo, bo = params
    cdt = jnp.dtype(compute_dtype) if compute_dtype is not None else x.dtype

    # ---- 1. fused QKV projection: one (B*S, E) @ (E, 3E) wide-N matmul --------
    w_qkv = jnp.concatenate([wq, wk, wv], axis=0).T.astype(cdt)           # (E, 3E)
    b_qkv = jnp.concatenate([bq, bk, bv], axis=0).reshape(1, 3 * E).astype(jnp.float32)
    x2 = x.reshape(B * S, E).astype(cdt)
    qkv = _matmul_bias(x2, w_qkv, b_qkv, out_dtype=cdt, tm=tm)            # (B*S, 3E)

    # ---- head-major split: pure layout (no replication of activations) --------
    qkv = qkv.reshape(B, S, 3, H, dh)

    def heads(i):
        return qkv[:, :, i].transpose(0, 2, 1, 3).reshape(B * H, S, dh)

    q, k, v = heads(0), heads(1), heads(2)

    # ---- 2. flash attention over (batch*head, q-tile, kv-tile) ----------------
    ctx = _flash_attention(q, k, v, scale=1.0 / math.sqrt(dh), tq=tq, tk=tk)

    # ---- 3. out projection: single contraction over the full E = H*dh axis ----
    ctx = ctx.reshape(B, H, S, dh).transpose(0, 2, 1, 3).reshape(B * S, E).astype(cdt)
    out = _matmul_bias(ctx, wo.T.astype(cdt),
                       bo.reshape(1, E).astype(jnp.float32),
                       out_dtype=x.dtype, tm=tm)
    return out.reshape(B, S, E)


# ----------------------------------------------------------------------------
# Pure-JAX reference (mirrors the PyTorch forward exactly)
# ----------------------------------------------------------------------------
def reference_cross_attention(x, params, n_heads):
    wq, bq, wk, bk, wv, bv, wo, bo = params
    B, S, E = x.shape
    d_head = E // n_heads

    q = x @ wq.T + bq
    k = x @ wk.T + bk
    v = x @ wv.T + bv

    def split_heads(t):
        return t.reshape(B, S, n_heads, d_head).transpose(0, 2, 1, 3)

    q, k, v = split_heads(q), split_heads(k), split_heads(v)
    w = jnp.einsum("bhsd,bhtd->bhst", q, k) / math.sqrt(d_head)
    w = jax.nn.softmax(w, axis=-1)
    o = jnp.einsum("bhst,bhtd->bhsd", w, v)
    o = o.transpose(0, 2, 1, 3).reshape(B, S, E)
    return o @ wo.T + bo


if __name__ == "__main__":
    # Small shapes consistent with the module.
    B, S, E = 2, 8, 32          # batch, sequence, d_embed
    n_heads = 4                 # -> d_head = 8
    d_cross = 16
    S_y = 8

    key = jax.random.PRNGKey(0)
    keys = jax.random.split(key, 10)

    x = jax.random.normal(keys[0], (B, S, E), dtype=jnp.float32)
    y = jax.random.normal(keys[1], (B, S_y, d_cross), dtype=jnp.float32)  # unused, per reference

    def linear_params(kw, kb, out_dim, in_dim):
        bound = 1.0 / math.sqrt(in_dim)
        w = jax.random.uniform(kw, (out_dim, in_dim), jnp.float32, -bound, bound)
        b = jax.random.uniform(kb, (out_dim,), jnp.float32, -bound, bound)
        return w, b

    wq, bq = linear_params(keys[2], keys[3], E, E)
    wk, bk = linear_params(keys[4], keys[5], E, E)
    wv, bv = linear_params(keys[6], keys[7], E, E)
    wo, bo = linear_params(keys[8], keys[9], E, E)
    params = (wq, bq, wk, bk, wv, bv, wo, bo)

    attn_fn = jax.jit(cross_attention,
                      static_argnames=("n_heads", "compute_dtype", "tm", "tq", "tk"))
    out = attn_fn(x, y, params, n_heads=n_heads)   # f32 compute for tight parity
    out = jax.block_until_ready(out)

    ref = reference_cross_attention(x, params, n_heads)
    assert out.shape == (B, S, E)
    # Residual delta is dominated by TPU default matmul precision (both sides),
    # not kernel structure; the softmax normalization is an exact divide.
    err = jnp.max(jnp.abs(out - ref))
    assert jnp.allclose(out, ref, rtol=1e-2, atol=1e-2), f"max abs err: {err}"

    print("KERNEL_OK")
</pallas_src>

<mosaic_0001>
module attributes {stable_mosaic.version = 11 : i64} {
  func.func @_matmul_bias_kernel(%arg0: i32, %arg1: memref<16x32xf32, #tpu.memory_space<vmem>>, %arg2: memref<32x128xf32, #tpu.memory_space<vmem>>, %arg3: memref<1x128xf32, #tpu.memory_space<vmem>>, %arg4: memref<16x128xf32, #tpu.memory_space<vmem>>) attributes {dimension_semantics = [#tpu.dimension_semantics<parallel>], iteration_bounds = array<i64: 1>, scalar_prefetch = 0 : i64, scratch_operands = 0 : i64, tpu.core_type = #tpu.core_type<tc>, window_params = [{transform_indices = @transform_0, window_bounds = array<i64: 16, 32>}, {pipeline_mode = #tpu.pipeline_mode<synchronous>, transform_indices = @transform_1, window_bounds = array<i64: 32, 128>}, {pipeline_mode = #tpu.pipeline_mode<synchronous>, transform_indices = @transform_2, window_bounds = array<i64: 1, 128>}, {transform_indices = @transform_3, window_bounds = array<i64: 16, 128>}]} {
    %c0 = arith.constant 0 : index
    %c0_0 = arith.constant 0 : index
    %0 = vector.load %arg1[%c0, %c0_0] : memref<16x32xf32, #tpu.memory_space<vmem>>, vector<16x32xf32>
    %c0_1 = arith.constant 0 : index
    %c0_2 = arith.constant 0 : index
    %1 = vector.load %arg2[%c0_1, %c0_2] : memref<32x128xf32, #tpu.memory_space<vmem>>, vector<32x128xf32>
    %cst = arith.constant dense<0.000000e+00> : vector<16x128xf32>
    %2 = tpu.matmul %0, %1, %cst {dimension_numbers = #tpu.dot_dimension_numbers<[1], [0], [0], [1], [0, 0, 1, 1], [], []>} : vector<16x32xf32>, vector<32x128xf32>, vector<16x128xf32> -> vector<16x128xf32>
    %c0_3 = arith.constant 0 : index
    %c0_4 = arith.constant 0 : index
    %3 = vector.load %arg3[%c0_3, %c0_4] : memref<1x128xf32, #tpu.memory_space<vmem>>, vector<1x128xf32>
    %4 = vector.broadcast %3 : vector<1x128xf32> to vector<16x128xf32>
    %5 = arith.addf %2, %4 : vector<16x128xf32>
    %c0_5 = arith.constant 0 : index
    %c0_6 = arith.constant 0 : index
    %6 = vector.load %arg4[%c0_5, %c0_6] : memref<16x128xf32, #tpu.memory_space<vmem>>, vector<16x128xf32>
    tpu.vector_store %arg4[%c0_5, %c0_6], %5 {strides = array<i32>} : memref<16x128xf32, #tpu.memory_space<vmem>>, vector<16x128xf32>,
    return
  }
  func.func @transform_0(%arg0: i32) -> (i32, i32) {
    %c0_i32 = arith.constant 0 : i32
    %c0_i32_0 = arith.constant 0 : i32
    return %arg0, %c0_i32 : i32, i32
  }
  func.func @transform_1(%arg0: i32) -> (i32, i32) {
    %c0_i32 = arith.constant 0 : i32
    %c0_i32_0 = arith.constant 0 : i32
    %c0_i32_1 = arith.constant 0 : i32
    return %c0_i32, %c0_i32_0 : i32, i32
  }
  func.func @transform_2(%arg0: i32) -> (i32, i32) {
    %c0_i32 = arith.constant 0 : i32
    %c0_i32_0 = arith.constant 0 : i32
    %c0_i32_1 = arith.constant 0 : i32
    return %c0_i32, %c0_i32_0 : i32, i32
  }
  func.func @transform_3(%arg0: i32) -> (i32, i32) {
    %c0_i32 = arith.constant 0 : i32
    %c0_i32_0 = arith.constant 0 : i32
    return %arg0, %c0_i32 : i32, i32
  }
}

module attributes {stable_mosaic.version = 11 : i64} {
  func.func @_flash_attn_kernel(%arg0: i32, %arg1: i32, %arg2: i32, %arg3: memref<1x8x8xf32, #tpu.memory_space<vmem>>, %arg4: memref<1x8x8xf32, #tpu.memory_space<vmem>>, %arg5: memref<1x8x8xf32, #tpu.memory_space<vmem>>, %arg6: memref<1x8x8xf32, #tpu.memory_space<vmem>>, %arg7: memref<8x1xf32, #tpu.memory_space<vmem>>, %arg8: memref<8x1xf32, #tpu.memory_space<vmem>>, %arg9: memref<8x8xf32, #tpu.memory_space<vmem>>) attributes {dimension_semantics = [#tpu.dimension_semantics<parallel>, #tpu.dimension_semantics<parallel>, #tpu.dimension_semantics<arbitrary>], iteration_bounds = array<i64: 8, 1, 1>, scalar_prefetch = 0 : i64, scratch_operands = 3 : i64, tpu.core_type = #tpu.core_type<tc>, window_params = [{transform_indices = @transform_0, window_bounds = array<i64: 1, 8, 8>}, {transform_indices = @transform_1, window_bounds = array<i64: 1, 8, 8>}, {transform_indices = @transform_2, window_bounds = array<i64: 1, 8, 8>}, {transform_indices = @transform_3, window_bounds = array<i64: 1, 8, 8>}]} {
    %c0_i32 = arith.constant 0 : i32
    %0 = arith.cmpi eq, %arg2, %c0_i32 : i32
    %1 = arith.extui %0 : i1 to i32
    %c0_i32_0 = arith.constant 0 : i32
    %2 = arith.cmpi ne, %1, %c0_i32_0 : i32
    scf.if %2 {
      %cst_27 = arith.constant 0xFF800000 : f32
      %37 = vector.broadcast %cst_27 : f32 to vector<8x1xf32>
      %c0_28 = arith.constant 0 : index
      %c0_29 = arith.constant 0 : index
      %38 = vector.load %arg7[%c0_28, %c0_29] : memref<8x1xf32, #tpu.memory_space<vmem>>, vector<8x1xf32>
      tpu.vector_store %arg7[%c0_28, %c0_29], %37 {strides = array<i32>} : memref<8x1xf32, #tpu.memory_space<vmem>>, vector<8x1xf32>,
      %cst_30 = arith.constant 0.000000e+00 : f32
      %39 = vector.broadcast %cst_30 : f32 to vector<8x1xf32>
      %c0_31 = arith.constant 0 : index
      %c0_32 = arith.constant 0 : index
      %40 = vector.load %arg8[%c0_31, %c0_32] : memref<8x1xf32, #tpu.memory_space<vmem>>, vector<8x1xf32>
      tpu.vector_store %arg8[%c0_31, %c0_32], %39 {strides = array<i32>} : memref<8x1xf32, #tpu.memory_space<vmem>>, vector<8x1xf32>,
      %cst_33 = arith.constant 0.000000e+00 : f32
      %41 = vector.broadcast %cst_33 : f32 to vector<8x8xf32>
      %c0_34 = arith.constant 0 : index
      %c0_35 = arith.constant 0 : index
      %42 = vector.load %arg9[%c0_34, %c0_35] : memref<8x8xf32, #tpu.memory_space<vmem>>, vector<8x8xf32>
      tpu.vector_store %arg9[%c0_34, %c0_35], %41 {strides = array<i32>} : memref<8x8xf32, #tpu.memory_space<vmem>>, vector<8x8xf32>,
    } else {
    }
    %c0 = arith.constant 0 : index
    %c0_1 = arith.constant 0 : index
    %c0_2 = arith.constant 0 : index
    %3 = vector.load %arg3[%c0, %c0_1, %c0_2] : memref<1x8x8xf32, #tpu.memory_space<vmem>>, vector<1x8x8xf32>
    %4 = vector.shape_cast %3 : vector<1x8x8xf32> to vector<8x8xf32>
    %c0_3 = arith.constant 0 : index
    %c0_4 = arith.constant 0 : index
    %c0_5 = arith.constant 0 : index
    %5 = vector.load %arg4[%c0_3, %c0_4, %c0_5] : memref<1x8x8xf32, #tpu.memory_space<vmem>>, vector<1x8x8xf32>
    %6 = vector.shape_cast %5 : vector<1x8x8xf32> to vector<8x8xf32>
    %c0_6 = arith.constant 0 : index
    %c0_7 = arith.constant 0 : index
    %c0_8 = arith.constant 0 : index
    %7 = vector.load %arg5[%c0_6, %c0_7, %c0_8] : memref<1x8x8xf32, #tpu.memory_space<vmem>>, vector<1x8x8xf32>
    %8 = vector.shape_cast %7 : vector<1x8x8xf32> to vector<8x8xf32>
    %cst = arith.constant dense<0.000000e+00> : vector<8x8xf32>
    %9 = tpu.matmul %4, %6, %cst {dimension_numbers = #tpu.dot_dimension_numbers<[1], [1], [0], [0], [0, 0, 1, 0], [], []>} : vector<8x8xf32>, vector<8x8xf32>, vector<8x8xf32> -> vector<8x8xf32>
    %cst_9 = arith.constant 0.353553385 : f32
    %10 = vector.broadcast %cst_9 : f32 to vector<8x8xf32>
    %11 = arith.mulf %9, %10 : vector<8x8xf32>
    %c0_10 = arith.constant 0 : index
    %c0_11 = arith.constant 0 : index
    %12 = vector.load %arg7[%c0_10, %c0_11] : memref<8x1xf32, #tpu.memory_space<vmem>>, vector<8x1xf32>
    %cst_12 = arith.constant dense<0xFF800000> : vector<8xf32>
    %13 = vector.multi_reduction <maximumf>, %11, %cst_12 [1] : vector<8x8xf32> to vector<8xf32>
    %14 = vector.shape_cast %13 : vector<8xf32> to vector<8x1xf32>
    %15 = arith.maximumf %12, %14 : vector<8x1xf32>
    %16 = arith.subf %12, %15 : vector<8x1xf32>
    %17 = math.exp %16 : vector<8x1xf32>
    %18 = vector.broadcast %15 : vector<8x1xf32> to vector<8x8xf32>
    %19 = arith.subf %11, %18 : vector<8x8xf32>
    %20 = math.exp %19 : vector<8x8xf32>
    %c0_13 = arith.constant 0 : index
    %c0_14 = arith.constant 0 : index
    %21 = vector.load %arg8[%c0_13, %c0_14] : memref<8x1xf32, #tpu.memory_space<vmem>>, vector<8x1xf32>
    %22 = arith.mulf %17, %21 : vector<8x1xf32>
    %cst_15 = arith.constant dense<0.000000e+00> : vector<8xf32>
    %23 = vector.multi_reduction <add>, %20, %cst_15 [1] : vector<8x8xf32> to vector<8xf32>
    %24 = vector.shape_cast %23 : vector<8xf32> to vector<8x1xf32>
    %25 = arith.addf %22, %24 : vector<8x1xf32>
    %c0_16 = arith.constant 0 : index
    %c0_17 = arith.constant 0 : index
    %26 = vector.load %arg8[%c0_16, %c0_17] : memref<8x1xf32, #tpu.memory_space<vmem>>, vector<8x1xf32>
    tpu.vector_store %arg8[%c0_16, %c0_17], %25 {strides = array<i32>} : memref<8x1xf32, #tpu.memory_space<vmem>>, vector<8x1xf32>,
    %c0_18 = arith.constant 0 : index
    %c0_19 = arith.constant 0 : index
    %27 = vector.load %arg9[%c0_18, %c0_19] : memref<8x8xf32, #tpu.memory_space<vmem>>, vector<8x8xf32>
    %28 = vector.broadcast %17 : vector<8x1xf32> to vector<8x8xf32>
    %29 = arith.mulf %28, %27 : vector<8x8xf32>
    %cst_20 = arith.constant dense<0.000000e+00> : vector<8x8xf32>
    %30 = tpu.matmul %20, %8, %cst_20 {dimension_numbers = #tpu.dot_dimension_numbers<[1], [0], [0], [1], [0, 0, 1, 1], [], []>} : vector<8x8xf32>, vector<8x8xf32>, vector<8x8xf32> -> vector<8x8xf32>
    %31 = arith.addf %29, %30 : vector<8x8xf32>
    %c0_21 = arith.constant 0 : index
    %c0_22 = arith.constant 0 : index
    %32 = vector.load %arg9[%c0_21, %c0_22] : memref<8x8xf32, #tpu.memory_space<vmem>>, vector<8x8xf32>
    tpu.vector_store %arg9[%c0_21, %c0_22], %31 {strides = array<i32>} : memref<8x8xf32, #tpu.memory_space<vmem>>, vector<8x8xf32>,
    %c0_23 = arith.constant 0 : index
    %c0_24 = arith.constant 0 : index
    %33 = vector.load %arg7[%c0_23, %c0_24] : memref<8x1xf32, #tpu.memory_space<vmem>>, vector<8x1xf32>
    tpu.vector_store %arg7[%c0_23, %c0_24], %15 {strides = array<i32>} : memref<8x1xf32, #tpu.memory_space<vmem>>, vector<8x1xf32>,
    %c0_i32_25 = arith.constant 0 : i32
    %34 = arith.cmpi eq, %arg2, %c0_i32_25 : i32
    %35 = arith.extui %34 : i1 to i32
    %c0_i32_26 = arith.constant 0 : i32
    %36 = arith.cmpi ne, %35, %c0_i32_26 : i32
    scf.if %36 {
      %c0_27 = arith.constant 0 : index
      %c0_28 = arith.constant 0 : index
      %37 = vector.load %arg9[%c0_27, %c0_28] : memref<8x8xf32, #tpu.memory_space<vmem>>, vector<8x8xf32>
      %c0_29 = arith.constant 0 : index
      %c0_30 = arith.constant 0 : index
      %38 = vector.load %arg8[%c0_29, %c0_30] : memref<8x1xf32, #tpu.memory_space<vmem>>, vector<8x1xf32>
      %39 = vector.broadcast %38 : vector<8x1xf32> to vector<8x8xf32>
      %40 = arith.divf %37, %39 : vector<8x8xf32>
      %c0_31 = arith.constant 0 : index
      %c0_32 = arith.constant 0 : index
      %c0_33 = arith.constant 0 : index
      %41 = vector.load %arg6[%c0_31, %c0_32, %c0_33] : memref<1x8x8xf32, #tpu.memory_space<vmem>>, vector<1x8x8xf32>
      %42 = vector.shape_cast %41 : vector<1x8x8xf32> to vector<8x8xf32>
      %43 = vector.shape_cast %40 : vector<8x8xf32> to vector<1x8x8xf32>
      tpu.vector_store %arg6[%c0_31, %c0_32, %c0_33], %43 {strides = array<i32>} : memref<1x8x8xf32, #tpu.memory_space<vmem>>, vector<1x8x8xf32>,
    } else {
    }
    return
  }
  func.func @transform_0(%arg0: i32, %arg1: i32, %arg2: i32) -> (i32, i32, i32) {
    %c0_i32 = arith.constant 0 : i32
    %c0_i32_0 = arith.constant 0 : i32
    return %arg0, %arg1, %c0_i32 : i32, i32, i32
  }
  func.func @transform_1(%arg0: i32, %arg1: i32, %arg2: i32) -> (i32, i32, i32) {
    %c0_i32 = arith.constant 0 : i32
    %c0_i32_0 = arith.constant 0 : i32
    return %arg0, %arg2, %c0_i32 : i32, i32, i32
  }
  func.func @transform_2(%arg0: i32, %arg1: i32, %arg2: i32) -> (i32, i32, i32) {
    %c0_i32 = arith.constant 0 : i32
    %c0_i32_0 = arith.constant 0 : i32
    return %arg0, %arg2, %c0_i32 : i32, i32, i32
  }
  func.func @transform_3(%arg0: i32, %arg1: i32, %arg2: i32) -> (i32, i32, i32) {
    %c0_i32 = arith.constant 0 : i32
    %c0_i32_0 = arith.constant 0 : i32
    return %arg0, %arg1, %c0_i32 : i32, i32, i32
  }
}

</mosaic_0001>

<llo_original>
// kernel: cross_attention.4
$region0: #{cross_attention.4}
  #allocation0 [shape = 'u32[]', space=smem, size = 0x4, offset = 0x4, fixed_abs, tag = 'smem constant byte address 0x4 - core index']
  #allocation1 [shape = 'u32[72,128]{1,0:T(1,128)}', space=vmem, size = 0x9000, scoped, tag = 'internal scratch']
  #allocation2 [shape = 'f32[8,1]{1,0:T(8,128)}', space=vmem, size = 0x1000, scoped, tag = 'scratch operand']
  #allocation3 [shape = 'f32[8,1]{1,0:T(8,128)}', space=vmem, size = 0x1000, scoped, tag = 'scratch operand']
  #allocation4 [shape = 'f32[8,8]{1,0:T(8,128)}', space=vmem, size = 0x1000, scoped, tag = 'scratch operand']
  %s0 = inlined_call_operand.vmem [shape: f32[8,8,8], index: 0, kind: input, shape index: {}]
  %s1 = inlined_call_operand.vmem [shape: f32[8,8,8], index: 1, kind: input, shape index: {}]
  %s2 = inlined_call_operand.vmem [shape: f32[8,8,8], index: 2, kind: input, shape index: {}]
  %s3 = inlined_call_operand.vmem [shape: f32[8,8,8], index: 3, kind: output, shape index: {}]
  %s4 = sld [smem:[#allocation0]]
  $region53: #{cross_attention.4} parent=0
    _
  %s6 = ssub.s32 1, %s4
  %s7 = scalar_select 0, %s6, %s4
  loop: start=0, step=1, limit=10
  $region2: #{cross_attention.4} parent=0 // loop_pre_header
    _
  $region3: #{cross_attention.4} parent=0 // loop_header
    %s9 = sphi 0, %s13
    %p10 = scmp.ge.s32.totalorder %s9, 10
    %s16 = sphi 0, %s35
    %s17 = sphi 0, %s31
    %s18 = sphi 0, %s27
    %s19 = sphi 0, %s16
    %s20 = sphi 0, %s17
    %s21 = sphi 0, %s18
    %s22 = sphi 0, %s19
    %s23 = sphi 0, %s20
    %s24 = sphi 0, %s21
    %s40 = sphi 0, %s42
    %s43 = sphi 0, %s40
    %s44 = sphi 0, %s43
    %s60 = sphi 0, %s44
    %s68 = sphi 0, %s70
    %s71 = sphi 0, %s68
    %s72 = sphi 0, %s71
    %s88 = sphi 0, %s72
    %s96 = sphi 0, %s98
    %s99 = sphi 0, %s96
    %s100 = sphi 0, %s99
    %s116 = sphi 0, %s100
    %s124 = sphi 0, %s126
    %s127 = sphi 0, %s124
    %s128 = sphi 0, %s127
    %s144 = sphi 0, %s128
  $region4: #{cross_attention.4} parent=0 // loop_header_branch
    %12 = sbr.rel (%p10) target = $region8
  $region5: #{cross_attention.4} parent=0 // loop_body
    %s14 = ssub.s32 %s9, 1
    %s15 = ssub.s32 %s9, 2
    %s25 = sadd.s32 1, %s18
    %p26 = scmp.ge.s32.totalorder %s25, 1
    %s27 = scalar_select %p26, 0, %s25
    %s28 = sadd.s32 1, %s17
    %s29 = scalar_select %p26, %s28, %s17
    %p30 = scmp.ge.s32.totalorder %s29, 1
    %s31 = scalar_select %p30, 0, %s29
    %s32 = sadd.s32 1, %s16
    %s33 = scalar_select %p30, %s32, %s16
    %p34 = scmp.ge.s32.totalorder %s33, 8
    %s35 = scalar_select %p34, 0, %s33
    %s36 = ssub.s32 %s16, %s35
    %s37 = ssub.s32 %s17, %s31
    %s38 = sor.u32 %s36, %s37
    %p39 = scmp.eq.s32.totalorder %s38, 0
    %s41 = sadd.s32 %s40, 1
    %s42 = scalar_select %p39, %s40, %s41
    %p45 = pneg %p39
    %p46 = scmp.eq.s32.totalorder %s9, 7
    %p47 = por %p45, %p46
    %p48 = scmp.ne.s32.totalorder %s40, %s43
    %p49 = scmp.eq.s32.totalorder %s9, 0
    %p50 = por %p48, %p49
    %p51 = scmp.ne.s32.totalorder %s40, %s43
    %p52 = scmp.eq.s32.totalorder %s14, 7
    %p53 = por %p51, %p52
    %p54 = scmp.ne.s32.totalorder %s43, %s44
    %p55 = scmp.eq.s32.totalorder %s14, 0
    %p56 = por %p54, %p55
    %p57 = scmp.ne.s32.totalorder %s43, %s44
    %p58 = scmp.eq.s32.totalorder %s15, 7
    %p59 = por %p57, %p58
    %p61 = scmp.ne.s32.totalorder %s44, %s60
    %p62 = scmp.eq.s32.totalorder %s15, 0
    %p63 = por %p61, %p62
    %s64 = ssub.s32 %s16, %s35
    %s65 = ssub.s32 %s18, %s27
    %s66 = sor.u32 %s64, %s65
    %p67 = scmp.eq.s32.totalorder %s66, 0
    %s69 = sadd.s32 %s68, 1
    %s70 = scalar_select %p67, %s68, %s69
    %p73 = pneg %p67
    %p74 = scmp.eq.s32.totalorder %s9, 7
    %p75 = por %p73, %p74
    %p76 = scmp.ne.s32.totalorder %s68, %s71
    %p77 = scmp.eq.s32.totalorder %s9, 0
    %p78 = por %p76, %p77
    %p79 = scmp.ne.s32.totalorder %s68, %s71
    %p80 = scmp.eq.s32.totalorder %s14, 7
    %p81 = por %p79, %p80
    %p82 = scmp.ne.s32.totalorder %s71, %s72
    %p83 = scmp.eq.s32.totalorder %s14, 0
    %p84 = por %p82, %p83
    %p85 = scmp.ne.s32.totalorder %s71, %s72
    %p86 = scmp.eq.s32.totalorder %s15, 7
    %p87 = por %p85, %p86
    %p89 = scmp.ne.s32.totalorder %s72, %s88
    %p90 = scmp.eq.s32.totalorder %s15, 0
    %p91 = por %p89, %p90
    %s92 = ssub.s32 %s16, %s35
    %s93 = ssub.s32 %s18, %s27
    %s94 = sor.u32 %s92, %s93
    %p95 = scmp.eq.s32.totalorder %s94, 0
    %s97 = sadd.s32 %s96, 1
    %s98 = scalar_select %p95, %s96, %s97
    %p101 = pneg %p95
    %p102 = scmp.eq.s32.totalorder %s9, 7
    %p103 = por %p101, %p102
    %p104 = scmp.ne.s32.totalorder %s96, %s99
    %p105 = scmp.eq.s32.totalorder %s9, 0
    %p106 = por %p104, %p105
    %p107 = scmp.ne.s32.totalorder %s96, %s99
    %p108 = scmp.eq.s32.totalorder %s14, 7
    %p109 = por %p107, %p108
    %p110 = scmp.ne.s32.totalorder %s99, %s100
    %p111 = scmp.eq.s32.totalorder %s14, 0
    %p112 = por %p110, %p111
    %p113 = scmp.ne.s32.totalorder %s99, %s100
    %p114 = scmp.eq.s32.totalorder %s15, 7
    %p115 = por %p113, %p114
    %p117 = scmp.ne.s32.totalorder %s100, %s116
    %p118 = scmp.eq.s32.totalorder %s15, 0
    %p119 = por %p117, %p118
    %s120 = ssub.s32 %s16, %s35
    %s121 = ssub.s32 %s17, %s31
    %s122 = sor.u32 %s120, %s121
    %p123 = scmp.eq.s32.totalorder %s122, 0
    %s125 = sadd.s32 %s124, 1
    %s126 = scalar_select %p123, %s124, %s125
    %p129 = pneg %p123
    %p130 = scmp.eq.s32.totalorder %s9, 7
    %p131 = por %p129, %p130
    %p132 = scmp.ne.s32.totalorder %s124, %s127
    %p133 = scmp.eq.s32.totalorder %s9, 0
    %p134 = por %p132, %p133
    %p135 = scmp.ne.s32.totalorder %s124, %s127
    %p136 = scmp.eq.s32.totalorder %s14, 7
    %p137 = por %p135, %p136
    %p138 = scmp.ne.s32.totalorder %s127, %s128
    %p139 = scmp.eq.s32.totalorder %s14, 0
    %p140 = por %p138, %p139
    %p141 = scmp.ne.s32.totalorder %s127, %s128
    %p142 = scmp.eq.s32.totalorder %s15, 7
    %p143 = por %p141, %p142
    %p145 = scmp.ne.s32.totalorder %s128, %s144
    %p146 = scmp.eq.s32.totalorder %s15, 0
    %p147 = por %p145, %p146
    %p148 = scmp.le.s32.totalorder 1, %s9
    %p149 = scmp.lt.s32.totalorder %s9, 9
    %p150 = pnand %p148, %p149
    %p151 = pneg %p150
    // Predicated region
    $region9: #{cross_attention.4} parent=5 // pred_check
      _
    $region10: #{cross_attention.4} parent=5 // pred_check_branch
      %153 = sbr.rel (%p150) target = $region12
    $region11: #{cross_attention.4} parent=5 // pred_region
      %s154 = ssub.s32 %s9, 1
    $region12: #{cross_attention.4} parent=5 // pred_fallthru
      _
    %p155 = scmp.lt.s32.totalorder %s9, 8
    // Predicated region
    $region13: #{cross_attention.4} parent=5 // pred_check
      %p156 = pneg %p155
    $region14: #{cross_attention.4} parent=5 // pred_check_branch
      %158 = sbr.rel (%p156) target = $region16
    $region15: #{cross_attention.4} parent=5 // pred_region
      // Predicated region
      $region17: #{cross_attention.4} parent=15 // pred_check
        %p159 = pneg %p50
      $region18: #{cross_attention.4} parent=15 // pred_check_branch
        %161 = sbr.rel (%p159) target = $region20
      $region19: #{cross_attention.4} parent=15 // pred_region
        %p162 = scmp.lt.s32.totalorder %s16, 7
        %s163 = scalar_select %p162, %s16, 7
        %p164 = scmp.lt.s32.totalorder %s17, 0
        %s165 = scalar_select %p164, %s17, 0
        %s166 = sadd.s32 %s165, %s163
        %s167 = smul.addr %s166, 8
        %s168 = scalar_lea.vmem %s0, %s167
      $region20: #{cross_attention.4} parent=15 // pred_fallthru
        _
      // Predicated region
      $region21: #{cross_attention.4} parent=15 // pred_check
        %p169 = pneg %p78
      $region22: #{cross_attention.4} parent=15 // pred_check_branch
        %171 = sbr.rel (%p169) target = $region24
      $region23: #{cross_attention.4} parent=15 // pred_region
        %p172 = scmp.lt.s32.totalorder %s16, 7
        %s173 = scalar_select %p172, %s16, 7
        %p174 = scmp.lt.s32.totalorder %s18, 0
        %s175 = scalar_select %p174, %s18, 0
        %s176 = sadd.s32 %s175, %s173
        %s177 = smul.addr %s176, 8
        %s178 = scalar_lea.vmem %s1, %s177
      $region24: #{cross_attention.4} parent=15 // pred_fallthru
        _
      // Predicated region
      $region25: #{cross_attention.4} parent=15 // pred_check
        %p179 = pneg %p106
      $region26: #{cross_attention.4} parent=15 // pred_check_branch
        %181 = sbr.rel (%p179) target = $region28
      $region27: #{cross_attention.4} parent=15 // pred_region
        %p182 = scmp.lt.s32.totalorder %s16, 7
        %s183 = scalar_select %p182, %s16, 7
        %p184 = scmp.lt.s32.totalorder %s18, 0
        %s185 = scalar_select %p184, %s18, 0
        %s186 = sadd.s32 %s185, %s183
        %s187 = smul.addr %s186, 8
        %s188 = scalar_lea.vmem %s2, %s187
      $region28: #{cross_attention.4} parent=15 // pred_fallthru
        _
    $region16: #{cross_attention.4} parent=5 // pred_fallthru
      _
    %p189 = scmp.le.s32.totalorder 1, %s9
    %p190 = scmp.lt.s32.totalorder %s9, 9
    %p191 = pnand %p189, %p190
    %p192 = pneg %p191
    // Predicated region
    $region29: #{cross_attention.4} parent=5 // pred_check
      _
    $region30: #{cross_attention.4} parent=5 // pred_check_branch
      %194 = sbr.rel (%p191) target = $region32
    $region31: #{cross_attention.4} parent=5 // pred_region
      %s195 = ssub.s32 %s9, 1
      %p196 = scmp.lt.s32.totalorder %s19, 7
      %s197 = scalar_select %p196, %s19, 7
      %p198 = scmp.lt.s32.totalorder %s20, 0
      %s199 = scalar_select %p198, %s20, 0
      %s200 = sadd.s32 %s199, %s197
      %s201 = smul.addr %s200, 8
      %s202 = scalar_lea.vmem %s0, %s201
      %p203 = pneg %p56
      %p204 = pneg %p53
      %p205 = scmp.lt.s32.totalorder %s19, 7
      %s206 = scalar_select %p205, %s19, 7
      %p207 = scmp.lt.s32.totalorder %s21, 0
      %s208 = scalar_select %p207, %s21, 0
      %s209 = sadd.s32 %s208, %s206
      %s210 = smul.addr %s209, 8
      %s211 = scalar_lea.vmem %s1, %s210
      %p212 = pneg %p84
      %p213 = pneg %p81
      %p214 = scmp.lt.s32.totalorder %s19, 7
      %s215 = scalar_select %p214, %s19, 7
      %p216 = scmp.lt.s32.totalorder %s21, 0
      %s217 = scalar_select %p216, %s21, 0
      %s218 = sadd.s32 %s217, %s215
      %s219 = smul.addr %s218, 8
      %s220 = scalar_lea.vmem %s2, %s219
      %p221 = pneg %p112
      %p222 = pneg %p109
      %p223 = pneg %p140
      %p224 = pneg %p137
      %p225 = scmp.lt.s32.totalorder %s19, 7
      %s226 = scalar_select %p225, %s19, 7
      %p227 = scmp.lt.s32.totalorder %s20, 0
      %s228 = scalar_select %p227, %s20, 0
      %s229 = sadd.s32 %s228, %s226
      %s230 = smul.addr %s229, 8
      %s231 = scalar_lea.vmem %s3, %s230
      %p232 = scmp.lt.s32.totalorder %s19, 7
      %s233 = scalar_select %p232, %s19, 7
      %p234 = scmp.lt.s32.totalorder %s20, 0
      %s235 = scalar_select %p234, %s20, 0
      %s236 = sadd.s32 %s235, %s233
      %s237 = smul.addr %s236, 8
      %s238 = scalar_lea.vmem %s0, %s237
      %p239 = scmp.lt.s32.totalorder %s19, 7
      %s240 = scalar_select %p239, %s19, 7
      %p241 = scmp.lt.s32.totalorder %s21, 0
      %s242 = scalar_select %p241, %s21, 0
      %s243 = sadd.s32 %s242, %s240
      %s244 = smul.addr %s243, 8
      %s245 = scalar_lea.vmem %s1, %s244
      %p246 = scmp.lt.s32.totalorder %s19, 7
      %s247 = scalar_select %p246, %s19, 7
      %p248 = scmp.lt.s32.totalorder %s21, 0
      %s249 = scalar_select %p248, %s21, 0
      %s250 = sadd.s32 %s249, %s247
      %s251 = smul.addr %s250, 8
      %s252 = scalar_lea.vmem %s2, %s251
      %p253 = scmp.lt.s32.totalorder %s19, 7
      %s254 = scalar_select %p253, %s19, 7
      %p255 = scmp.lt.s32.totalorder %s20, 0
      %s256 = scalar_select %p255, %s20, 0
      %s257 = sadd.s32 %s256, %s254
      %s258 = smul.addr %s257, 8
      %s259 = scalar_lea.vmem %s3, %s258
      %p260 = scmp.eq.s32.totalorder %s21, 0
      // Predicated region
      $region33: #{cross_attention.4} parent=31 // pred_check
        %p261 = pneg %p260
      $region34: #{cross_attention.4} parent=31 // pred_check_branch
        %263 = sbr.rel (%p261) target = $region36
      $region35: #{cross_attention.4} parent=31 // pred_region
        %vm264 = vcmask 7168
        %265 = vst.msk [vmem:[#allocation2] sm:$0xff] %vm264, -inf
        %266 = vst.msk [vmem:[#allocation3] sm:$0xff] %vm264, 0.0
        %vm267 = vcmask 64512
        %268 = vst.msk [vmem:[#allocation4] sm:$0xff] %vm267, 0.0
      $region36: #{cross_attention.4} parent=31 // pred_fallthru
        _
      %v269 = vld [vmem:[%s238] sm:$0xff]
      %v270 = vld [vmem:[%s245] sm:$0xff]
      %v271 = vld [vmem:[%s252] sm:$0xff]
      %vm272 = vcmask 64512
      %v274 = vsel %vm272, %v269, 0
      %v277 = vsel %vm272, %v270, 0
      %279 = vmatpush.xpose.msra.mxu0 0.0
      %280 = vmatpush.xpose.msra.mxu0 0.0
      %281 = vmatpush.xpose.msra.mxu0 0.0
      %282 = vmatpush.xpose.msra.mxu0 0.0
      %283 = vmatpush.xpose.msra.mxu0 0.0
      %284 = vmatpush.xpose.msra.mxu0 0.0
      %285 = vmatpush.xpose.msra.mxu0 0.0
      %286 = vmatpush.xpose.msra.mxu0 0.0
      %287 = vmatpush.xpose.msra.mxu0 0.0
      %288 = vmatpush.xpose.msra.mxu0 0.0
      %289 = vmatpush.xpose.msra.mxu0 0.0
      %290 = vmatpush.xpose.msra.mxu0 0.0
      %291 = vmatpush.xpose.msra.mxu0 0.0
      %292 = vmatpush.xpose.msra.mxu0 0.0
      %293 = vmatpush.xpose.msra.mxu0 0.0
      %294 = vmatpush.xpose.msra.mxu0 %v277
      %295 = vmatmul.f32.gmra.mxu0 %v274
      %v296 = vpop.f32.mrf.mxu0
      %v297 = vadd.f32 0.0, %v296
      %298 = vdwg.mxu0
      %v299 = vmul.f32 %v297, 0.35355338
      %v300 = vld [vmem:[#allocation2] sm:$0xff]
      %v301 = vsel %vm272, %v299, -inf
      %302 = vmax.xlane.f32.xlu0 %v301
      %v303 = vpop.xlane.xlu0 %302
      %v304 = vmax.f32 %v300, %v303
      %v305 = vsub.f32 %v300, %v304
      %v306 = vmul.f32 %v305, 1.442695
      %v307 = vpow.pop %v306
      %309 = vset.pattern.permute.xlu0 0
      %310 = vperm.xlu0 %309, %v304
      %v311 = vpop.permute.xlu0 %310
      %v313 = vsub.f32 %v299, %v311
      %v314 = vmul.f32 %v313, 1.442695
      %v315 = vpow.pop %v314
      %v316 = vld [vmem:[#allocation3] sm:$0xff]
      %v317 = vmul.f32 %v307, %v316
      %v318 = vsel %vm272, %v315, 0.0
      %319 = vadd.xlane.f32.xlu0 %v318
      %v320 = vpop.xlane.xlu0 %319
      %v321 = vadd.f32 %v317, %v320
      %vm322 = vcmask 7168
      %323 = vst.msk [vmem:[#allocation3] sm:$0xff] %vm322, %v321
      %v324 = vld [vmem:[#allocation4] sm:$0xff]
      %326 = vset.pattern.permute.xlu0 0
      %327 = vperm.xlu0 %326, %v307
      %v328 = vpop.permute.xlu0 %327
      %v330 = vmul.f32 %v328, %v324
      %v332 = vsel %vm272, %v315, 0
      %334 = vmatpush.msra.mxu0 0.0
      %335 = vmatpush.msra.mxu0 0.0
      %336 = vmatpush.msra.mxu0 0.0
      %337 = vmatpush.msra.mxu0 0.0
      %338 = vmatpush.msra.mxu0 0.0
      %339 = vmatpush.msra.mxu0 0.0
      %340 = vmatpush.msra.mxu0 0.0
      %341 = vmatpush.msra.mxu0 0.0
      %342 = vmatpush.msra.mxu0 0.0
      %343 = vmatpush.msra.mxu0 0.0
      %344 = vmatpush.msra.mxu0 0.0
      %345 = vmatpush.msra.mxu0 0.0
      %346 = vmatpush.msra.mxu0 0.0
      %347 = vmatpush.msra.mxu0 0.0
      %348 = vmatpush.msra.mxu0 0.0
      %349 = vmatpush.msra.mxu0 %v271
      %350 = vmatmul.f32.gmra.mxu0 %v332
      %v351 = vpop.f32.mrf.mxu0
      %v352 = vadd.f32 0.0, %v351
      %353 = vdwg.mxu0
      %v354 = vadd.f32 %v330, %v352
      %355 = vst.msk [vmem:[#allocation4] sm:$0xff] %vm272, %v354
      %356 = vst.msk [vmem:[#allocation2] sm:$0xff] %vm322, %v304
      // Predicated region
      $region37: #{cross_attention.4} parent=31 // pred_check
        %p357 = pneg %p260
      $region38: #{cross_attention.4} parent=31 // pred_check_branch
        %359 = sbr.rel (%p357) target = $region40
      $region39: #{cross_attention.4} parent=31 // pred_region
        %v360 = vld [vmem:[#allocation4] sm:$0xff]
        %v361 = vld [vmem:[#allocation3] sm:$0xff]
        %363 = vset.pattern.permute.xlu0 0
        %364 = vperm.xlu0 %363, %v361
        %v365 = vpop.permute.xlu0 %364
        %v367 = vrcp.pop %v365
        %v368 = vmul.f32 %v365, %v367
        %v369 = vsub.f32 1.0, %v368
        %v370 = vmul.f32 %v367, %v369
        %v371 = vadd.f32 %v367, %v370
        %vm372 = vweird.f32 %v365
        %vm373 = vweird.f32 %v367
        %vm374 = vmor %vm372, %vm373
        %v375 = vsel %vm374, %v367, %v371
        %v376 = vand.u32 2147483647, %v365
        %vm377 = vcmp.eq.f32.partialorder %v376, 8.507059e+37
        %v378 = vand.u32 %v365, 2147483648
        %v379 = vor.u32 1.1754944e-38, %v378
        %v380 = vsel %vm377, %v379, %v375
        %v381 = vmul.f32 %v360, %v380
        %382 = vst.msk [vmem:[%s259] sm:$0xff] %vm272, %v381
      $region40: #{cross_attention.4} parent=31 // pred_fallthru
        _
      %p383 = scmp.lt.s32.totalorder %s19, 7
      %s384 = scalar_select %p383, %s19, 7
      %p385 = scmp.lt.s32.totalorder %s20, 0
      %s386 = scalar_select %p385, %s20, 0
      %s387 = sadd.s32 %s386, %s384
      %s388 = smul.addr %s387, 8
      %s389 = scalar_lea.vmem %s3, %s388
      // Predicated region
      $region41: #{cross_attention.4} parent=31 // pred_check
        %p390 = pneg %p137
      $region42: #{cross_attention.4} parent=31 // pred_check_branch
        %392 = sbr.rel (%p390) target = $region44
      $region43: #{cross_attention.4} parent=31 // pred_region
        _
      $region44: #{cross_attention.4} parent=31 // pred_fallthru
        _
    $region32: #{cross_attention.4} parent=5 // pred_fallthru
      _
    %p393 = scmp.le.s32.totalorder 2, %s9
    // Predicated region
    $region45: #{cross_attention.4} parent=5 // pred_check
      %p394 = pneg %p393
    $region46: #{cross_attention.4} parent=5 // pred_check_branch
      %396 = sbr.rel (%p394) target = $region48
    $region47: #{cross_attention.4} parent=5 // pred_region
      %s397 = ssub.s32 %s9, 2
      // Predicated region
      $region49: #{cross_attention.4} parent=47 // pred_check
        %p398 = pneg %p143
      $region50: #{cross_attention.4} parent=47 // pred_check_branch
        %400 = sbr.rel (%p398) target = $region52
      $region51: #{cross_attention.4} parent=47 // pred_region
        %p401 = scmp.lt.s32.totalorder %s22, 7
        %s402 = scalar_select %p401, %s22, 7
        %p403 = scmp.lt.s32.totalorder %s23, 0
        %s404 = scalar_select %p403, %s23, 0
        %s405 = sadd.s32 %s404, %s402
        %s406 = smul.addr %s405, 8
        %s407 = scalar_lea.vmem %s3, %s406
      $region52: #{cross_attention.4} parent=47 // pred_fallthru
        _
    $region48: #{cross_attention.4} parent=5 // pred_fallthru
      _
  $region6: #{cross_attention.4} parent=0 // loop_footer
    %s13 = sadd.s32 1, %s9
  $region7: #{cross_attention.4} parent=0 // loop_footer_branch
    %8 = sbr.rel target = $region3
  $region8: #{cross_attention.4} parent=0 // loop_exit
    _

// kernel: cross_attention.3
$region0: #{cross_attention.3}
  #allocation0 [shape = 'u32[]', space=smem, size = 0x4, offset = 0x4, fixed_abs, tag = 'smem constant byte address 0x4 - core index']
  #allocation1 [shape = 'u32[72,128]{1,0:T(1,128)}', space=vmem, size = 0x9000, scoped, tag = 'internal scratch']
  %s0 = inlined_call_operand.vmem [shape: f32[16,32], index: 0, kind: input, shape index: {}]
  %s1 = inlined_call_operand.vmem [shape: f32[32,128], index: 1, kind: input, shape index: {}]
  %s2 = inlined_call_operand.vmem [shape: f32[1,128], index: 2, kind: input, shape index: {}]
  %s3 = inlined_call_operand.vmem [shape: f32[16,128], index: 3, kind: output, shape index: {}]
  %s4 = sld [smem:[#allocation0]]
  $region22: #{cross_attention.3} parent=0
    _
  %s6 = ssub.s32 1, %s4
  %s7 = scalar_select 0, %s6, %s4
  // Predicated region
  $region2: #{cross_attention.3} parent=0 // pred_check
    _
  $region3: #{cross_attention.3} parent=0 // pred_check_branch
    %9 = sbr.rel (0) target = $region5
  $region4: #{cross_attention.3} parent=0 // pred_region
    _
  $region5: #{cross_attention.3} parent=0 // pred_fallthru
    _
  // Predicated region
  $region6: #{cross_attention.3} parent=0 // pred_check
    _
  $region7: #{cross_attention.3} parent=0 // pred_check_branch
    %11 = sbr.rel (0) target = $region9
  $region8: #{cross_attention.3} parent=0 // pred_region
    _
  $region9: #{cross_attention.3} parent=0 // pred_fallthru
    _
  // Predicated region
  $region10: #{cross_attention.3} parent=0 // pred_check
    _
  $region11: #{cross_attention.3} parent=0 // pred_check_branch
    %13 = sbr.rel (0) target = $region13
  $region12: #{cross_attention.3} parent=0 // pred_region
    _
  $region13: #{cross_attention.3} parent=0 // pred_fallthru
    _
  %v14 = vld [vmem:[%s0] sm:$0xff]
  %v15 = vld [vmem:[%s0 + $0x8] sm:$0xff]
  %v16 = vld [vmem:[%s1] sm:$0xff]
  %v17 = vld [vmem:[%s1 + $0x8] sm:$0xff]
  %v18 = vld [vmem:[%s1 + $0x10] sm:$0xff]
  %v19 = vld [vmem:[%s1 + $0x18] sm:$0xff]
  %v20 = vld [vmem:[%s2] sm:$0x1]
  %v22 = vperm.slane %v20, 0
  %vm24 = vcmask 261120
  %v26 = vsel %vm24, %v14, 0
  %v29 = vsel %vm24, %v15, 0
  %31 = vmatpush.msra.mxu0 0.0
  %32 = vmatpush.msra.mxu0 0.0
  %33 = vmatpush.msra.mxu0 0.0
  %34 = vmatpush.msra.mxu0 0.0
  %35 = vmatpush.msra.mxu0 0.0
  %36 = vmatpush.msra.mxu0 0.0
  %37 = vmatpush.msra.mxu0 0.0
  %38 = vmatpush.msra.mxu0 0.0
  %39 = vmatpush.msra.mxu0 0.0
  %40 = vmatpush.msra.mxu0 0.0
  %41 = vmatpush.msra.mxu0 0.0
  %42 = vmatpush.msra.mxu0 0.0
  %43 = vmatpush.msra.mxu0 %v19
  %44 = vmatpush.msra.mxu0 %v18
  %45 = vmatpush.msra.mxu0 %v17
  %46 = vmatpush.msra.mxu0 %v16
  %47 = vmatmul.f32.gmra.mxu0 %v26
  %v48 = vpop.f32.mrf.mxu0
  %v49 = vadd.f32 %v22, %v48
  %50 = vmatmul.f32.gmra.mxu0 %v29
  %v51 = vpop.f32.mrf.mxu0
  %v52 = vadd.f32 %v22, %v51
  %53 = vdwg.mxu0
  %54 = vst [vmem:[%s3] sm:$0xff] %v49
  %55 = vst [vmem:[%s3 + $0x8] sm:$0xff] %v52
  // Predicated region
  $region14: #{cross_attention.3} parent=0 // pred_check
    _
  $region15: #{cross_attention.3} parent=0 // pred_check_branch
    %57 = sbr.rel (0) target = $region17
  $region16: #{cross_attention.3} parent=0 // pred_region
    _
  $region17: #{cross_attention.3} parent=0 // pred_fallthru
    _
  // Predicated region
  $region18: #{cross_attention.3} parent=0 // pred_check
    _
  $region19: #{cross_attention.3} parent=0 // pred_check_branch
    %59 = sbr.rel (0) target = $region21
  $region20: #{cross_attention.3} parent=0 // pred_region
    _
  $region21: #{cross_attention.3} parent=0 // pred_fallthru
    _

</llo_original>
